<compile_context>
chip_gen: v5e
topology: v5e:2x2
jax: 0.10.0
libtpu: 0.0.40
codegen_flags: <defaults>
</compile_context>

<pallas_src>
import math
from functools import partial

import jax
import jax.numpy as jnp
from jax.experimental import pallas as pl
from jax.experimental.pallas import tpu as pltpu

# 3x3 tap offsets, row-major over (ky, kx) = (dy + 1, dx + 1).
_TAPS = [(-1, -1), (-1, 0), (-1, 1),
         (0, -1), (0, 0), (0, 1),
         (1, -1), (1, 0), (1, 1)]


def _shift_lanes(h, k, hw):
    """s[:, i] = h[:, i + k] for 0 <= i + k < hw, zeros elsewhere (k static)."""
    c = h.shape[0]
    if k == 0:
        return h
    if k > 0:
        return jnp.concatenate(
            [h[:, k:hw], jnp.zeros((c, k), h.dtype)], axis=1)
    return jnp.concatenate(
        [jnp.zeros((c, -k), h.dtype), h[:, 0:hw + k]], axis=1)


def _double_conv_kernel(x_ref, m_ref, w1_ref, b1_ref, w2_ref, b2_ref, o_ref,
                        *, h2, w2):
    """Fused (conv3x3 + BN + ReLU) x 2 for one pooled image.

    x_ref : (1, C_in, H*W)     pooled image, pixels on lanes
    m_ref : (9, 1, H*W)        0/1 source-validity mask per tap (zero padding)
    w1_ref: (9, C_mid, C_in)   conv1 weights per tap, BN1 folded in
    b1_ref: (C_mid, 1)         conv1 bias + BN1 shift
    w2_ref: (9, C_out, C_mid)  conv2 weights per tap, BN2 folded in
    b2_ref: (C_out, 1)
    o_ref : (1, C_out, H*W)
    """
    hw = h2 * w2
    x = x_ref[0]                                            # (C_in, HW)

    def conv3x3(h, w_ref_, b_ref_):
        acc = None
        for t, (dy, dx) in enumerate(_TAPS):
            k = dy * w2 + dx
            tap = _shift_lanes(h, k, hw) * m_ref[t]         # (C, HW)
            part = jnp.dot(w_ref_[t], tap,
                           preferred_element_type=jnp.float32)
            acc = part if acc is None else acc + part
        return acc + b_ref_[...]                            # (C', HW)

    h1 = jnp.maximum(conv3x3(x, w1_ref, b1_ref), 0.0)       # relu(bn(conv1))
    y = jnp.maximum(conv3x3(h1, w2_ref, b2_ref), 0.0)       # relu(bn(conv2))
    o_ref[0] = y.astype(o_ref.dtype)


def _fold_bn(w, b, gamma, beta, mean, var, eps):
    s = gamma / jnp.sqrt(var + eps)
    return w * s[:, None, None, None], (b - mean) * s + beta


def _tap_masks(h2, w2):
    col = jnp.arange(h2 * w2, dtype=jnp.int32)
    py, px = col // w2, col % w2
    rows = []
    for dy, dx in _TAPS:
        rows.append((py + dy >= 0) & (py + dy < h2) &
                    (px + dx >= 0) & (px + dx < w2))
    return jnp.stack(rows).astype(jnp.float32).reshape(9, 1, h2 * w2)


def down_forward(x, params, *, eps=1e-5):
    """Down forward: MaxPool2d(2) -> (Conv3x3+BN+ReLU) -> (Conv3x3+BN+ReLU).

    x: (N, C_in, H, W) float32, NCHW (PyTorch layout).
    returns: (N, C_out, H//2, W//2) float32, NCHW.
    """
    n, c_in, h, w = x.shape
    h2, w2 = h // 2, w // 2
    hw = h2 * w2

    # --- MaxPool2d(2) (XLA; see TODO at top). NCHW kept, no transposes.
    xc = x[:, :, :2 * h2, :2 * w2]
    pooled = xc.reshape(n, c_in, h2, 2, w2, 2).max(axis=(3, 5))
    pooled_flat = pooled.reshape(n, c_in, hw)                # free reshape

    # --- Fold inference-mode BatchNorm into the conv weights / biases.
    w1f, b1f = _fold_bn(params["w1"], params["b1"], params["g1"],
                        params["be1"], params["m1"], params["v1"], eps)
    w2f, b2f = _fold_bn(params["w2"], params["b2"], params["g2"],
                        params["be2"], params["m2"], params["v2"], eps)
    c_mid, c_out = w1f.shape[0], w2f.shape[0]

    # Per-tap weight matrices (tiny), tap index t = (dy+1)*3 + (dx+1).
    w1_taps = jnp.transpose(w1f, (2, 3, 0, 1)).reshape(9, c_mid, c_in)
    w2_taps = jnp.transpose(w2f, (2, 3, 0, 1)).reshape(9, c_out, c_mid)
    b1_col = b1f.reshape(c_mid, 1)
    b2_col = b2f.reshape(c_out, 1)
    masks = _tap_masks(h2, w2)

    kernel = partial(_double_conv_kernel, h2=h2, w2=w2)
    flops = 2 * n * hw * 9 * (c_in * c_mid + c_mid * c_out)
    bytes_accessed = 4 * (n * c_in * hw + n * c_out * hw + 9 * hw
                          + 9 * (c_mid * c_in + c_out * c_mid)
                          + c_mid + c_out)

    out_flat = pl.pallas_call(
        kernel,
        out_shape=jax.ShapeDtypeStruct((n, c_out, hw), x.dtype),
        grid_spec=pltpu.PrefetchScalarGridSpec(
            num_scalar_prefetch=0,
            grid=(n,),
            in_specs=[
                pl.BlockSpec((1, c_in, hw), lambda i: (i, 0, 0)),
                pl.BlockSpec((9, 1, hw), lambda i: (0, 0, 0)),
                pl.BlockSpec((9, c_mid, c_in), lambda i: (0, 0, 0)),
                pl.BlockSpec((c_mid, 1), lambda i: (0, 0)),
                pl.BlockSpec((9, c_out, c_mid), lambda i: (0, 0, 0)),
                pl.BlockSpec((c_out, 1), lambda i: (0, 0)),
            ],
            out_specs=pl.BlockSpec((1, c_out, hw), lambda i: (i, 0, 0)),
        ),
        compiler_params=pltpu.CompilerParams(
            dimension_semantics=("parallel",),
            vmem_limit_bytes=32 * 1024 * 1024,
        ),
        cost_estimate=pl.CostEstimate(
            flops=int(flops), transcendentals=0,
            bytes_accessed=int(bytes_accessed)),
    )(pooled_flat, masks, w1_taps, b1_col, w2_taps, b2_col)

    return out_flat.reshape(n, c_out, h2, w2)


def init_down_params(key, in_channels, out_channels, dtype=jnp.float32):
    """Deterministic init mimicking nn.Conv2d / nn.BatchNorm2d defaults."""
    ks = jax.random.split(key, 12)

    def conv_init(kw, kb, cin, cout):
        fan_in = cin * 9
        bw = math.sqrt(6.0 / ((1.0 + 5.0) * fan_in))  # kaiming_uniform, a=sqrt(5)
        wgt = jax.random.uniform(kw, (cout, cin, 3, 3), dtype, -bw, bw)
        bb = 1.0 / math.sqrt(fan_in)
        bias = jax.random.uniform(kb, (cout,), dtype, -bb, bb)
        return wgt, bias

    def bn_init(kg, kb, km, kv, c):
        g = 1.0 + 0.1 * jax.random.normal(kg, (c,), dtype)
        be = 0.1 * jax.random.normal(kb, (c,), dtype)
        m = 0.1 * jax.random.normal(km, (c,), dtype)
        v = 1.0 + 0.2 * jax.random.uniform(kv, (c,), dtype)
        return g, be, m, v

    w1, b1 = conv_init(ks[0], ks[1], in_channels, out_channels)
    w2, b2 = conv_init(ks[2], ks[3], out_channels, out_channels)
    g1, be1, m1, v1 = bn_init(ks[4], ks[5], ks[6], ks[7], out_channels)
    g2, be2, m2, v2 = bn_init(ks[8], ks[9], ks[10], ks[11], out_channels)
    return dict(w1=w1, b1=b1, g1=g1, be1=be1, m1=m1, v1=v1,
                w2=w2, b2=b2, g2=g2, be2=be2, m2=m2, v2=v2)


# ------------------------ plain-JAX reference ------------------------
def _conv3x3_ref(x, w, b):
    n, c, h, ww = x.shape
    xp = jnp.pad(x, ((0, 0), (0, 0), (1, 1), (1, 1)))
    out = jnp.zeros((n, w.shape[0], h, ww), jnp.float32)
    for ky in range(3):
        for kx in range(3):
            out = out + jnp.einsum(
                "oc,nchw->nohw", w[:, :, ky, kx],
                xp[:, :, ky:ky + h, kx:kx + ww],
                precision=jax.lax.Precision.HIGHEST)
    return out + b[None, :, None, None]


def _bn_ref(x, g, be, m, v, eps=1e-5):
    inv = g / jnp.sqrt(v + eps)
    return (x - m[None, :, None, None]) * inv[None, :, None, None] \
        + be[None, :, None, None]


def down_reference(x, p, eps=1e-5):
    pooled = jax.lax.reduce_window(
        x, -jnp.inf, jax.lax.max,
        window_dimensions=(1, 1, 2, 2), window_strides=(1, 1, 2, 2),
        padding="VALID")
    a = jax.nn.relu(_bn_ref(_conv3x3_ref(pooled, p["w1"], p["b1"]),
                            p["g1"], p["be1"], p["m1"], p["v1"], eps))
    return jax.nn.relu(_bn_ref(_conv3x3_ref(a, p["w2"], p["b2"]),
                               p["g2"], p["be2"], p["m2"], p["v2"], eps))


if __name__ == "__main__":
    key = jax.random.PRNGKey(0)
    k_x, k_p = jax.random.split(key)

    N, C_IN, C_OUT, H, W = 2, 4, 8, 16, 16
    x = jax.random.normal(k_x, (N, C_IN, H, W), jnp.float32)
    params = init_down_params(k_p, C_IN, C_OUT)

    y = down_forward(x, params)
    y = jax.block_until_ready(y)

    ref = down_reference(x, params)
    assert y.shape == (N, C_OUT, H // 2, W // 2), y.shape
    assert jnp.allclose(y, ref, atol=1e-3, rtol=1e-3), \
        float(jnp.max(jnp.abs(y - ref)))

    print("KERNEL_OK")
</pallas_src>

<mosaic_0001>
module attributes {stable_mosaic.version = 11 : i64} {
  func.func @_double_conv_kernel(%arg0: i32, %arg1: memref<1x4x64xf32, #tpu.memory_space<vmem>>, %arg2: memref<9x1x64xf32, #tpu.memory_space<vmem>>, %arg3: memref<9x8x4xf32, #tpu.memory_space<vmem>>, %arg4: memref<8x1xf32, #tpu.memory_space<vmem>>, %arg5: memref<9x8x8xf32, #tpu.memory_space<vmem>>, %arg6: memref<8x1xf32, #tpu.memory_space<vmem>>, %arg7: memref<1x8x64xf32, #tpu.memory_space<vmem>>) attributes {dimension_semantics = [#tpu.dimension_semantics<parallel>], iteration_bounds = array<i64: 2>, scalar_prefetch = 0 : i64, scratch_operands = 0 : i64, tpu.core_type = #tpu.core_type<tc>, window_params = [{transform_indices = @transform_0, window_bounds = array<i64: 1, 4, 64>}, {pipeline_mode = #tpu.pipeline_mode<synchronous>, transform_indices = @transform_1, window_bounds = array<i64: 9, 1, 64>}, {pipeline_mode = #tpu.pipeline_mode<synchronous>, transform_indices = @transform_2, window_bounds = array<i64: 9, 8, 4>}, {pipeline_mode = #tpu.pipeline_mode<synchronous>, transform_indices = @transform_3, window_bounds = array<i64: 8, 1>}, {pipeline_mode = #tpu.pipeline_mode<synchronous>, transform_indices = @transform_4, window_bounds = array<i64: 9, 8, 8>}, {pipeline_mode = #tpu.pipeline_mode<synchronous>, transform_indices = @transform_5, window_bounds = array<i64: 8, 1>}, {transform_indices = @transform_6, window_bounds = array<i64: 1, 8, 64>}]} {
    %c0 = arith.constant 0 : index
    %c0_0 = arith.constant 0 : index
    %c0_1 = arith.constant 0 : index
    %0 = vector.load %arg1[%c0, %c0_0, %c0_1] : memref<1x4x64xf32, #tpu.memory_space<vmem>>, vector<1x4x64xf32>
    %1 = vector.shape_cast %0 : vector<1x4x64xf32> to vector<4x64xf32>
    %cst = arith.constant 0.000000e+00 : f32
    %2 = vector.broadcast %cst : f32 to vector<4x9xf32>
    %3 = vector.extract_strided_slice %1 {offsets = [0, 0], sizes = [4, 55], strides = [1, 1]} : vector<4x64xf32> to vector<4x55xf32>
    %4 = tpu.concatenate %2, %3 in 1 : vector<4x9xf32>, vector<4x55xf32> -> vector<4x64xf32>
    %c0_2 = arith.constant 0 : index
    %c0_3 = arith.constant 0 : index
    %c0_4 = arith.constant 0 : index
    %5 = vector.load %arg2[%c0_2, %c0_3, %c0_4] : memref<9x1x64xf32, #tpu.memory_space<vmem>>, vector<1x1x64xf32>
    %6 = vector.shape_cast %5 : vector<1x1x64xf32> to vector<1x64xf32>
    %7 = vector.broadcast %6 : vector<1x64xf32> to vector<4x64xf32>
    %8 = arith.mulf %4, %7 : vector<4x64xf32>
    %c0_5 = arith.constant 0 : index
    %c0_6 = arith.constant 0 : index
    %c0_7 = arith.constant 0 : index
    %9 = vector.load %arg3[%c0_5, %c0_6, %c0_7] : memref<9x8x4xf32, #tpu.memory_space<vmem>>, vector<1x8x4xf32>
    %10 = vector.shape_cast %9 : vector<1x8x4xf32> to vector<8x4xf32>
    %cst_8 = arith.constant dense<0.000000e+00> : vector<8x64xf32>
    %11 = tpu.matmul %10, %8, %cst_8 {dimension_numbers = #tpu.dot_dimension_numbers<[1], [0], [0], [1], [0, 0, 1, 1], [], []>} : vector<8x4xf32>, vector<4x64xf32>, vector<8x64xf32> -> vector<8x64xf32>
    %cst_9 = arith.constant 0.000000e+00 : f32
    %12 = vector.broadcast %cst_9 : f32 to vector<4x8xf32>
    %13 = vector.extract_strided_slice %1 {offsets = [0, 0], sizes = [4, 56], strides = [1, 1]} : vector<4x64xf32> to vector<4x56xf32>
    %14 = tpu.concatenate %12, %13 in 1 : vector<4x8xf32>, vector<4x56xf32> -> vector<4x64xf32>
    %c1 = arith.constant 1 : index
    %c0_10 = arith.constant 0 : index
    %c0_11 = arith.constant 0 : index
    %15 = vector.load %arg2[%c1, %c0_10, %c0_11] : memref<9x1x64xf32, #tpu.memory_space<vmem>>, vector<1x1x64xf32>
    %16 = vector.shape_cast %15 : vector<1x1x64xf32> to vector<1x64xf32>
    %17 = vector.broadcast %16 : vector<1x64xf32> to vector<4x64xf32>
    %18 = arith.mulf %14, %17 : vector<4x64xf32>
    %c1_12 = arith.constant 1 : index
    %c0_13 = arith.constant 0 : index
    %c0_14 = arith.constant 0 : index
    %19 = vector.load %arg3[%c1_12, %c0_13, %c0_14] : memref<9x8x4xf32, #tpu.memory_space<vmem>>, vector<1x8x4xf32>
    %20 = vector.shape_cast %19 : vector<1x8x4xf32> to vector<8x4xf32>
    %cst_15 = arith.constant dense<0.000000e+00> : vector<8x64xf32>
    %21 = tpu.matmul %20, %18, %cst_15 {dimension_numbers = #tpu.dot_dimension_numbers<[1], [0], [0], [1], [0, 0, 1, 1], [], []>} : vector<8x4xf32>, vector<4x64xf32>, vector<8x64xf32> -> vector<8x64xf32>
    %22 = arith.addf %11, %21 : vector<8x64xf32>
    %cst_16 = arith.constant 0.000000e+00 : f32
    %23 = vector.broadcast %cst_16 : f32 to vector<4x7xf32>
    %24 = vector.extract_strided_slice %1 {offsets = [0, 0], sizes = [4, 57], strides = [1, 1]} : vector<4x64xf32> to vector<4x57xf32>
    %25 = tpu.concatenate %23, %24 in 1 : vector<4x7xf32>, vector<4x57xf32> -> vector<4x64xf32>
    %c2 = arith.constant 2 : index
    %c0_17 = arith.constant 0 : index
    %c0_18 = arith.constant 0 : index
    %26 = vector.load %arg2[%c2, %c0_17, %c0_18] : memref<9x1x64xf32, #tpu.memory_space<vmem>>, vector<1x1x64xf32>
    %27 = vector.shape_cast %26 : vector<1x1x64xf32> to vector<1x64xf32>
    %28 = vector.broadcast %27 : vector<1x64xf32> to vector<4x64xf32>
    %29 = arith.mulf %25, %28 : vector<4x64xf32>
    %c2_19 = arith.constant 2 : index
    %c0_20 = arith.constant 0 : index
    %c0_21 = arith.constant 0 : index
    %30 = vector.load %arg3[%c2_19, %c0_20, %c0_21] : memref<9x8x4xf32, #tpu.memory_space<vmem>>, vector<1x8x4xf32>
    %31 = vector.shape_cast %30 : vector<1x8x4xf32> to vector<8x4xf32>
    %cst_22 = arith.constant dense<0.000000e+00> : vector<8x64xf32>
    %32 = tpu.matmul %31, %29, %cst_22 {dimension_numbers = #tpu.dot_dimension_numbers<[1], [0], [0], [1], [0, 0, 1, 1], [], []>} : vector<8x4xf32>, vector<4x64xf32>, vector<8x64xf32> -> vector<8x64xf32>
    %33 = arith.addf %22, %32 : vector<8x64xf32>
    %cst_23 = arith.constant 0.000000e+00 : f32
    %34 = vector.broadcast %cst_23 : f32 to vector<4x1xf32>
    %35 = vector.extract_strided_slice %1 {offsets = [0, 0], sizes = [4, 63], strides = [1, 1]} : vector<4x64xf32> to vector<4x63xf32>
    %36 = tpu.concatenate %34, %35 in 1 : vector<4x1xf32>, vector<4x63xf32> -> vector<4x64xf32>
    %c3 = arith.constant 3 : index
    %c0_24 = arith.constant 0 : index
    %c0_25 = arith.constant 0 : index
    %37 = vector.load %arg2[%c3, %c0_24, %c0_25] : memref<9x1x64xf32, #tpu.memory_space<vmem>>, vector<1x1x64xf32>
    %38 = vector.shape_cast %37 : vector<1x1x64xf32> to vector<1x64xf32>
    %39 = vector.broadcast %38 : vector<1x64xf32> to vector<4x64xf32>
    %40 = arith.mulf %36, %39 : vector<4x64xf32>
    %c3_26 = arith.constant 3 : index
    %c0_27 = arith.constant 0 : index
    %c0_28 = arith.constant 0 : index
    %41 = vector.load %arg3[%c3_26, %c0_27, %c0_28] : memref<9x8x4xf32, #tpu.memory_space<vmem>>, vector<1x8x4xf32>
    %42 = vector.shape_cast %41 : vector<1x8x4xf32> to vector<8x4xf32>
    %cst_29 = arith.constant dense<0.000000e+00> : vector<8x64xf32>
    %43 = tpu.matmul %42, %40, %cst_29 {dimension_numbers = #tpu.dot_dimension_numbers<[1], [0], [0], [1], [0, 0, 1, 1], [], []>} : vector<8x4xf32>, vector<4x64xf32>, vector<8x64xf32> -> vector<8x64xf32>
    %44 = arith.addf %33, %43 : vector<8x64xf32>
    %c4 = arith.constant 4 : index
    %c0_30 = arith.constant 0 : index
    %c0_31 = arith.constant 0 : index
    %45 = vector.load %arg2[%c4, %c0_30, %c0_31] : memref<9x1x64xf32, #tpu.memory_space<vmem>>, vector<1x1x64xf32>
    %46 = vector.shape_cast %45 : vector<1x1x64xf32> to vector<1x64xf32>
    %47 = vector.broadcast %46 : vector<1x64xf32> to vector<4x64xf32>
    %48 = arith.mulf %1, %47 : vector<4x64xf32>
    %c4_32 = arith.constant 4 : index
    %c0_33 = arith.constant 0 : index
    %c0_34 = arith.constant 0 : index
    %49 = vector.load %arg3[%c4_32, %c0_33, %c0_34] : memref<9x8x4xf32, #tpu.memory_space<vmem>>, vector<1x8x4xf32>
    %50 = vector.shape_cast %49 : vector<1x8x4xf32> to vector<8x4xf32>
    %cst_35 = arith.constant dense<0.000000e+00> : vector<8x64xf32>
    %51 = tpu.matmul %50, %48, %cst_35 {dimension_numbers = #tpu.dot_dimension_numbers<[1], [0], [0], [1], [0, 0, 1, 1], [], []>} : vector<8x4xf32>, vector<4x64xf32>, vector<8x64xf32> -> vector<8x64xf32>
    %52 = arith.addf %44, %51 : vector<8x64xf32>
    %53 = vector.extract_strided_slice %1 {offsets = [0, 1], sizes = [4, 63], strides = [1, 1]} : vector<4x64xf32> to vector<4x63xf32>
    %cst_36 = arith.constant 0.000000e+00 : f32
    %54 = vector.broadcast %cst_36 : f32 to vector<4x1xf32>
    %55 = tpu.concatenate %53, %54 in 1 : vector<4x63xf32>, vector<4x1xf32> -> vector<4x64xf32>
    %c5 = arith.constant 5 : index
    %c0_37 = arith.constant 0 : index
    %c0_38 = arith.constant 0 : index
    %56 = vector.load %arg2[%c5, %c0_37, %c0_38] : memref<9x1x64xf32, #tpu.memory_space<vmem>>, vector<1x1x64xf32>
    %57 = vector.shape_cast %56 : vector<1x1x64xf32> to vector<1x64xf32>
    %58 = vector.broadcast %57 : vector<1x64xf32> to vector<4x64xf32>
    %59 = arith.mulf %55, %58 : vector<4x64xf32>
    %c5_39 = arith.constant 5 : index
    %c0_40 = arith.constant 0 : index
    %c0_41 = arith.constant 0 : index
    %60 = vector.load %arg3[%c5_39, %c0_40, %c0_41] : memref<9x8x4xf32, #tpu.memory_space<vmem>>, vector<1x8x4xf32>
    %61 = vector.shape_cast %60 : vector<1x8x4xf32> to vector<8x4xf32>
    %cst_42 = arith.constant dense<0.000000e+00> : vector<8x64xf32>
    %62 = tpu.matmul %61, %59, %cst_42 {dimension_numbers = #tpu.dot_dimension_numbers<[1], [0], [0], [1], [0, 0, 1, 1], [], []>} : vector<8x4xf32>, vector<4x64xf32>, vector<8x64xf32> -> vector<8x64xf32>
    %63 = arith.addf %52, %62 : vector<8x64xf32>
    %64 = vector.extract_strided_slice %1 {offsets = [0, 7], sizes = [4, 57], strides = [1, 1]} : vector<4x64xf32> to vector<4x57xf32>
    %cst_43 = arith.constant 0.000000e+00 : f32
    %65 = vector.broadcast %cst_43 : f32 to vector<4x7xf32>
    %66 = tpu.concatenate %64, %65 in 1 : vector<4x57xf32>, vector<4x7xf32> -> vector<4x64xf32>
    %c6 = arith.constant 6 : index
    %c0_44 = arith.constant 0 : index
    %c0_45 = arith.constant 0 : index
    %67 = vector.load %arg2[%c6, %c0_44, %c0_45] : memref<9x1x64xf32, #tpu.memory_space<vmem>>, vector<1x1x64xf32>
    %68 = vector.shape_cast %67 : vector<1x1x64xf32> to vector<1x64xf32>
    %69 = vector.broadcast %68 : vector<1x64xf32> to vector<4x64xf32>
    %70 = arith.mulf %66, %69 : vector<4x64xf32>
    %c6_46 = arith.constant 6 : index
    %c0_47 = arith.constant 0 : index
    %c0_48 = arith.constant 0 : index
    %71 = vector.load %arg3[%c6_46, %c0_47, %c0_48] : memref<9x8x4xf32, #tpu.memory_space<vmem>>, vector<1x8x4xf32>
    %72 = vector.shape_cast %71 : vector<1x8x4xf32> to vector<8x4xf32>
    %cst_49 = arith.constant dense<0.000000e+00> : vector<8x64xf32>
    %73 = tpu.matmul %72, %70, %cst_49 {dimension_numbers = #tpu.dot_dimension_numbers<[1], [0], [0], [1], [0, 0, 1, 1], [], []>} : vector<8x4xf32>, vector<4x64xf32>, vector<8x64xf32> -> vector<8x64xf32>
    %74 = arith.addf %63, %73 : vector<8x64xf32>
    %75 = vector.extract_strided_slice %1 {offsets = [0, 8], sizes = [4, 56], strides = [1, 1]} : vector<4x64xf32> to vector<4x56xf32>
    %cst_50 = arith.constant 0.000000e+00 : f32
    %76 = vector.broadcast %cst_50 : f32 to vector<4x8xf32>
    %77 = tpu.concatenate %75, %76 in 1 : vector<4x56xf32>, vector<4x8xf32> -> vector<4x64xf32>
    %c7 = arith.constant 7 : index
    %c0_51 = arith.constant 0 : index
    %c0_52 = arith.constant 0 : index
    %78 = vector.load %arg2[%c7, %c0_51, %c0_52] : memref<9x1x64xf32, #tpu.memory_space<vmem>>, vector<1x1x64xf32>
    %79 = vector.shape_cast %78 : vector<1x1x64xf32> to vector<1x64xf32>
    %80 = vector.broadcast %79 : vector<1x64xf32> to vector<4x64xf32>
    %81 = arith.mulf %77, %80 : vector<4x64xf32>
    %c7_53 = arith.constant 7 : index
    %c0_54 = arith.constant 0 : index
    %c0_55 = arith.constant 0 : index
    %82 = vector.load %arg3[%c7_53, %c0_54, %c0_55] : memref<9x8x4xf32, #tpu.memory_space<vmem>>, vector<1x8x4xf32>
    %83 = vector.shape_cast %82 : vector<1x8x4xf32> to vector<8x4xf32>
    %cst_56 = arith.constant dense<0.000000e+00> : vector<8x64xf32>
    %84 = tpu.matmul %83, %81, %cst_56 {dimension_numbers = #tpu.dot_dimension_numbers<[1], [0], [0], [1], [0, 0, 1, 1], [], []>} : vector<8x4xf32>, vector<4x64xf32>, vector<8x64xf32> -> vector<8x64xf32>
    %85 = arith.addf %74, %84 : vector<8x64xf32>
    %86 = vector.extract_strided_slice %1 {offsets = [0, 9], sizes = [4, 55], strides = [1, 1]} : vector<4x64xf32> to vector<4x55xf32>
    %cst_57 = arith.constant 0.000000e+00 : f32
    %87 = vector.broadcast %cst_57 : f32 to vector<4x9xf32>
    %88 = tpu.concatenate %86, %87 in 1 : vector<4x55xf32>, vector<4x9xf32> -> vector<4x64xf32>
    %c8 = arith.constant 8 : index
    %c0_58 = arith.constant 0 : index
    %c0_59 = arith.constant 0 : index
    %89 = vector.load %arg2[%c8, %c0_58, %c0_59] : memref<9x1x64xf32, #tpu.memory_space<vmem>>, vector<1x1x64xf32>
    %90 = vector.shape_cast %89 : vector<1x1x64xf32> to vector<1x64xf32>
    %91 = vector.broadcast %90 : vector<1x64xf32> to vector<4x64xf32>
    %92 = arith.mulf %88, %91 : vector<4x64xf32>
    %c8_60 = arith.constant 8 : index
    %c0_61 = arith.constant 0 : index
    %c0_62 = arith.constant 0 : index
    %93 = vector.load %arg3[%c8_60, %c0_61, %c0_62] : memref<9x8x4xf32, #tpu.memory_space<vmem>>, vector<1x8x4xf32>
    %94 = vector.shape_cast %93 : vector<1x8x4xf32> to vector<8x4xf32>
    %cst_63 = arith.constant dense<0.000000e+00> : vector<8x64xf32>
    %95 = tpu.matmul %94, %92, %cst_63 {dimension_numbers = #tpu.dot_dimension_numbers<[1], [0], [0], [1], [0, 0, 1, 1], [], []>} : vector<8x4xf32>, vector<4x64xf32>, vector<8x64xf32> -> vector<8x64xf32>
    %96 = arith.addf %85, %95 : vector<8x64xf32>
    %c0_64 = arith.constant 0 : index
    %c0_65 = arith.constant 0 : index
    %97 = vector.load %arg4[%c0_64, %c0_65] : memref<8x1xf32, #tpu.memory_space<vmem>>, vector<8x1xf32>
    %98 = vector.broadcast %97 : vector<8x1xf32> to vector<8x64xf32>
    %99 = arith.addf %96, %98 : vector<8x64xf32>
    %cst_66 = arith.constant 0.000000e+00 : f32
    %100 = vector.broadcast %cst_66 : f32 to vector<8x64xf32>
    %101 = arith.maximumf %99, %100 : vector<8x64xf32>
    %cst_67 = arith.constant 0.000000e+00 : f32
    %102 = vector.broadcast %cst_67 : f32 to vector<8x9xf32>
    %103 = vector.extract_strided_slice %101 {offsets = [0, 0], sizes = [8, 55], strides = [1, 1]} : vector<8x64xf32> to vector<8x55xf32>
    %104 = tpu.concatenate %102, %103 in 1 : vector<8x9xf32>, vector<8x55xf32> -> vector<8x64xf32>
    %c0_68 = arith.constant 0 : index
    %c0_69 = arith.constant 0 : index
    %c0_70 = arith.constant 0 : index
    %105 = vector.load %arg2[%c0_68, %c0_69, %c0_70] : memref<9x1x64xf32, #tpu.memory_space<vmem>>, vector<1x1x64xf32>
    %106 = vector.shape_cast %105 : vector<1x1x64xf32> to vector<1x64xf32>
    %107 = vector.broadcast %106 : vector<1x64xf32> to vector<8x64xf32>
    %108 = arith.mulf %104, %107 : vector<8x64xf32>
    %c0_71 = arith.constant 0 : index
    %c0_72 = arith.constant 0 : index
    %c0_73 = arith.constant 0 : index
    %109 = vector.load %arg5[%c0_71, %c0_72, %c0_73] : memref<9x8x8xf32, #tpu.memory_space<vmem>>, vector<1x8x8xf32>
    %110 = vector.shape_cast %109 : vector<1x8x8xf32> to vector<8x8xf32>
    %cst_74 = arith.constant dense<0.000000e+00> : vector<8x64xf32>
    %111 = tpu.matmul %110, %108, %cst_74 {dimension_numbers = #tpu.dot_dimension_numbers<[1], [0], [0], [1], [0, 0, 1, 1], [], []>} : vector<8x8xf32>, vector<8x64xf32>, vector<8x64xf32> -> vector<8x64xf32>
    %cst_75 = arith.constant 0.000000e+00 : f32
    %112 = vector.broadcast %cst_75 : f32 to vector<8x8xf32>
    %113 = vector.extract_strided_slice %101 {offsets = [0, 0], sizes = [8, 56], strides = [1, 1]} : vector<8x64xf32> to vector<8x56xf32>
    %114 = tpu.concatenate %112, %113 in 1 : vector<8x8xf32>, vector<8x56xf32> -> vector<8x64xf32>
    %c1_76 = arith.constant 1 : index
    %c0_77 = arith.constant 0 : index
    %c0_78 = arith.constant 0 : index
    %115 = vector.load %arg2[%c1_76, %c0_77, %c0_78] : memref<9x1x64xf32, #tpu.memory_space<vmem>>, vector<1x1x64xf32>
    %116 = vector.shape_cast %115 : vector<1x1x64xf32> to vector<1x64xf32>
    %117 = vector.broadcast %116 : vector<1x64xf32> to vector<8x64xf32>
    %118 = arith.mulf %114, %117 : vector<8x64xf32>
    %c1_79 = arith.constant 1 : index
    %c0_80 = arith.constant 0 : index
    %c0_81 = arith.constant 0 : index
    %119 = vector.load %arg5[%c1_79, %c0_80, %c0_81] : memref<9x8x8xf32, #tpu.memory_space<vmem>>, vector<1x8x8xf32>
    %120 = vector.shape_cast %119 : vector<1x8x8xf32> to vector<8x8xf32>
    %cst_82 = arith.constant dense<0.000000e+00> : vector<8x64xf32>
    %121 = tpu.matmul %120, %118, %cst_82 {dimension_numbers = #tpu.dot_dimension_numbers<[1], [0], [0], [1], [0, 0, 1, 1], [], []>} : vector<8x8xf32>, vector<8x64xf32>, vector<8x64xf32> -> vector<8x64xf32>
    %122 = arith.addf %111, %121 : vector<8x64xf32>
    %cst_83 = arith.constant 0.000000e+00 : f32
    %123 = vector.broadcast %cst_83 : f32 to vector<8x7xf32>
    %124 = vector.extract_strided_slice %101 {offsets = [0, 0], sizes = [8, 57], strides = [1, 1]} : vector<8x64xf32> to vector<8x57xf32>
    %125 = tpu.concatenate %123, %124 in 1 : vector<8x7xf32>, vector<8x57xf32> -> vector<8x64xf32>
    %c2_84 = arith.constant 2 : index
    %c0_85 = arith.constant 0 : index
    %c0_86 = arith.constant 0 : index
    %126 = vector.load %arg2[%c2_84, %c0_85, %c0_86] : memref<9x1x64xf32, #tpu.memory_space<vmem>>, vector<1x1x64xf32>
    %127 = vector.shape_cast %126 : vector<1x1x64xf32> to vector<1x64xf32>
    %128 = vector.broadcast %127 : vector<1x64xf32> to vector<8x64xf32>
    %129 = arith.mulf %125, %128 : vector<8x64xf32>
    %c2_87 = arith.constant 2 : index
    %c0_88 = arith.constant 0 : index
    %c0_89 = arith.constant 0 : index
    %130 = vector.load %arg5[%c2_87, %c0_88, %c0_89] : memref<9x8x8xf32, #tpu.memory_space<vmem>>, vector<1x8x8xf32>
    %131 = vector.shape_cast %130 : vector<1x8x8xf32> to vector<8x8xf32>
    %cst_90 = arith.constant dense<0.000000e+00> : vector<8x64xf32>
    %132 = tpu.matmul %131, %129, %cst_90 {dimension_numbers = #tpu.dot_dimension_numbers<[1], [0], [0], [1], [0, 0, 1, 1], [], []>} : vector<8x8xf32>, vector<8x64xf32>, vector<8x64xf32> -> vector<8x64xf32>
    %133 = arith.addf %122, %132 : vector<8x64xf32>
    %cst_91 = arith.constant 0.000000e+00 : f32
    %134 = vector.broadcast %cst_91 : f32 to vector<8x1xf32>
    %135 = vector.extract_strided_slice %101 {offsets = [0, 0], sizes = [8, 63], strides = [1, 1]} : vector<8x64xf32> to vector<8x63xf32>
    %136 = tpu.concatenate %134, %135 in 1 : vector<8x1xf32>, vector<8x63xf32> -> vector<8x64xf32>
    %c3_92 = arith.constant 3 : index
    %c0_93 = arith.constant 0 : index
    %c0_94 = arith.constant 0 : index
    %137 = vector.load %arg2[%c3_92, %c0_93, %c0_94] : memref<9x1x64xf32, #tpu.memory_space<vmem>>, vector<1x1x64xf32>
    %138 = vector.shape_cast %137 : vector<1x1x64xf32> to vector<1x64xf32>
    %139 = vector.broadcast %138 : vector<1x64xf32> to vector<8x64xf32>
    %140 = arith.mulf %136, %139 : vector<8x64xf32>
    %c3_95 = arith.constant 3 : index
    %c0_96 = arith.constant 0 : index
    %c0_97 = arith.constant 0 : index
    %141 = vector.load %arg5[%c3_95, %c0_96, %c0_97] : memref<9x8x8xf32, #tpu.memory_space<vmem>>, vector<1x8x8xf32>
    %142 = vector.shape_cast %141 : vector<1x8x8xf32> to vector<8x8xf32>
    %cst_98 = arith.constant dense<0.000000e+00> : vector<8x64xf32>
    %143 = tpu.matmul %142, %140, %cst_98 {dimension_numbers = #tpu.dot_dimension_numbers<[1], [0], [0], [1], [0, 0, 1, 1], [], []>} : vector<8x8xf32>, vector<8x64xf32>, vector<8x64xf32> -> vector<8x64xf32>
    %144 = arith.addf %133, %143 : vector<8x64xf32>
    %c4_99 = arith.constant 4 : index
    %c0_100 = arith.constant 0 : index
    %c0_101 = arith.constant 0 : index
    %145 = vector.load %arg2[%c4_99, %c0_100, %c0_101] : memref<9x1x64xf32, #tpu.memory_space<vmem>>, vector<1x1x64xf32>
    %146 = vector.shape_cast %145 : vector<1x1x64xf32> to vector<1x64xf32>
    %147 = vector.broadcast %146 : vector<1x64xf32> to vector<8x64xf32>
    %148 = arith.mulf %101, %147 : vector<8x64xf32>
    %c4_102 = arith.constant 4 : index
    %c0_103 = arith.constant 0 : index
    %c0_104 = arith.constant 0 : index
    %149 = vector.load %arg5[%c4_102, %c0_103, %c0_104] : memref<9x8x8xf32, #tpu.memory_space<vmem>>, vector<1x8x8xf32>
    %150 = vector.shape_cast %149 : vector<1x8x8xf32> to vector<8x8xf32>
    %cst_105 = arith.constant dense<0.000000e+00> : vector<8x64xf32>
    %151 = tpu.matmul %150, %148, %cst_105 {dimension_numbers = #tpu.dot_dimension_numbers<[1], [0], [0], [1], [0, 0, 1, 1], [], []>} : vector<8x8xf32>, vector<8x64xf32>, vector<8x64xf32> -> vector<8x64xf32>
    %152 = arith.addf %144, %151 : vector<8x64xf32>
    %153 = vector.extract_strided_slice %101 {offsets = [0, 1], sizes = [8, 63], strides = [1, 1]} : vector<8x64xf32> to vector<8x63xf32>
    %cst_106 = arith.constant 0.000000e+00 : f32
    %154 = vector.broadcast %cst_106 : f32 to vector<8x1xf32>
    %155 = tpu.concatenate %153, %154 in 1 : vector<8x63xf32>, vector<8x1xf32> -> vector<8x64xf32>
    %c5_107 = arith.constant 5 : index
    %c0_108 = arith.constant 0 : index
    %c0_109 = arith.constant 0 : index
    %156 = vector.load %arg2[%c5_107, %c0_108, %c0_109] : memref<9x1x64xf32, #tpu.memory_space<vmem>>, vector<1x1x64xf32>
    %157 = vector.shape_cast %156 : vector<1x1x64xf32> to vector<1x64xf32>
    %158 = vector.broadcast %157 : vector<1x64xf32> to vector<8x64xf32>
    %159 = arith.mulf %155, %158 : vector<8x64xf32>
    %c5_110 = arith.constant 5 : index
    %c0_111 = arith.constant 0 : index
    %c0_112 = arith.constant 0 : index
    %160 = vector.load %arg5[%c5_110, %c0_111, %c0_112] : memref<9x8x8xf32, #tpu.memory_space<vmem>>, vector<1x8x8xf32>
    %161 = vector.shape_cast %160 : vector<1x8x8xf32> to vector<8x8xf32>
    %cst_113 = arith.constant dense<0.000000e+00> : vector<8x64xf32>
    %162 = tpu.matmul %161, %159, %cst_113 {dimension_numbers = #tpu.dot_dimension_numbers<[1], [0], [0], [1], [0, 0, 1, 1], [], []>} : vector<8x8xf32>, vector<8x64xf32>, vector<8x64xf32> -> vector<8x64xf32>
    %163 = arith.addf %152, %162 : vector<8x64xf32>
    %164 = vector.extract_strided_slice %101 {offsets = [0, 7], sizes = [8, 57], strides = [1, 1]} : vector<8x64xf32> to vector<8x57xf32>
    %cst_114 = arith.constant 0.000000e+00 : f32
    %165 = vector.broadcast %cst_114 : f32 to vector<8x7xf32>
    %166 = tpu.concatenate %164, %165 in 1 : vector<8x57xf32>, vector<8x7xf32> -> vector<8x64xf32>
    %c6_115 = arith.constant 6 : index
    %c0_116 = arith.constant 0 : index
    %c0_117 = arith.constant 0 : index
    %167 = vector.load %arg2[%c6_115, %c0_116, %c0_117] : memref<9x1x64xf32, #tpu.memory_space<vmem>>, vector<1x1x64xf32>
    %168 = vector.shape_cast %167 : vector<1x1x64xf32> to vector<1x64xf32>
    %169 = vector.broadcast %168 : vector<1x64xf32> to vector<8x64xf32>
    %170 = arith.mulf %166, %169 : vector<8x64xf32>
    %c6_118 = arith.constant 6 : index
    %c0_119 = arith.constant 0 : index
    %c0_120 = arith.constant 0 : index
    %171 = vector.load %arg5[%c6_118, %c0_119, %c0_120] : memref<9x8x8xf32, #tpu.memory_space<vmem>>, vector<1x8x8xf32>
    %172 = vector.shape_cast %171 : vector<1x8x8xf32> to vector<8x8xf32>
    %cst_121 = arith.constant dense<0.000000e+00> : vector<8x64xf32>
    %173 = tpu.matmul %172, %170, %cst_121 {dimension_numbers = #tpu.dot_dimension_numbers<[1], [0], [0], [1], [0, 0, 1, 1], [], []>} : vector<8x8xf32>, vector<8x64xf32>, vector<8x64xf32> -> vector<8x64xf32>
    %174 = arith.addf %163, %173 : vector<8x64xf32>
    %175 = vector.extract_strided_slice %101 {offsets = [0, 8], sizes = [8, 56], strides = [1, 1]} : vector<8x64xf32> to vector<8x56xf32>
    %cst_122 = arith.constant 0.000000e+00 : f32
    %176 = vector.broadcast %cst_122 : f32 to vector<8x8xf32>
    %177 = tpu.concatenate %175, %176 in 1 : vector<8x56xf32>, vector<8x8xf32> -> vector<8x64xf32>
    %c7_123 = arith.constant 7 : index
    %c0_124 = arith.constant 0 : index
    %c0_125 = arith.constant 0 : index
    %178 = vector.load %arg2[%c7_123, %c0_124, %c0_125] : memref<9x1x64xf32, #tpu.memory_space<vmem>>, vector<1x1x64xf32>
    %179 = vector.shape_cast %178 : vector<1x1x64xf32> to vector<1x64xf32>
    %180 = vector.broadcast %179 : vector<1x64xf32> to vector<8x64xf32>
    %181 = arith.mulf %177, %180 : vector<8x64xf32>
    %c7_126 = arith.constant 7 : index
    %c0_127 = arith.constant 0 : index
    %c0_128 = arith.constant 0 : index
    %182 = vector.load %arg5[%c7_126, %c0_127, %c0_128] : memref<9x8x8xf32, #tpu.memory_space<vmem>>, vector<1x8x8xf32>
    %183 = vector.shape_cast %182 : vector<1x8x8xf32> to vector<8x8xf32>
    %cst_129 = arith.constant dense<0.000000e+00> : vector<8x64xf32>
    %184 = tpu.matmul %183, %181, %cst_129 {dimension_numbers = #tpu.dot_dimension_numbers<[1], [0], [0], [1], [0, 0, 1, 1], [], []>} : vector<8x8xf32>, vector<8x64xf32>, vector<8x64xf32> -> vector<8x64xf32>
    %185 = arith.addf %174, %184 : vector<8x64xf32>
    %186 = vector.extract_strided_slice %101 {offsets = [0, 9], sizes = [8, 55], strides = [1, 1]} : vector<8x64xf32> to vector<8x55xf32>
    %cst_130 = arith.constant 0.000000e+00 : f32
    %187 = vector.broadcast %cst_130 : f32 to vector<8x9xf32>
    %188 = tpu.concatenate %186, %187 in 1 : vector<8x55xf32>, vector<8x9xf32> -> vector<8x64xf32>
    %c8_131 = arith.constant 8 : index
    %c0_132 = arith.constant 0 : index
    %c0_133 = arith.constant 0 : index
    %189 = vector.load %arg2[%c8_131, %c0_132, %c0_133] : memref<9x1x64xf32, #tpu.memory_space<vmem>>, vector<1x1x64xf32>
    %190 = vector.shape_cast %189 : vector<1x1x64xf32> to vector<1x64xf32>
    %191 = vector.broadcast %190 : vector<1x64xf32> to vector<8x64xf32>
    %192 = arith.mulf %188, %191 : vector<8x64xf32>
    %c8_134 = arith.constant 8 : index
    %c0_135 = arith.constant 0 : index
    %c0_136 = arith.constant 0 : index
    %193 = vector.load %arg5[%c8_134, %c0_135, %c0_136] : memref<9x8x8xf32, #tpu.memory_space<vmem>>, vector<1x8x8xf32>
    %194 = vector.shape_cast %193 : vector<1x8x8xf32> to vector<8x8xf32>
    %cst_137 = arith.constant dense<0.000000e+00> : vector<8x64xf32>
    %195 = tpu.matmul %194, %192, %cst_137 {dimension_numbers = #tpu.dot_dimension_numbers<[1], [0], [0], [1], [0, 0, 1, 1], [], []>} : vector<8x8xf32>, vector<8x64xf32>, vector<8x64xf32> -> vector<8x64xf32>
    %196 = arith.addf %185, %195 : vector<8x64xf32>
    %c0_138 = arith.constant 0 : index
    %c0_139 = arith.constant 0 : index
    %197 = vector.load %arg6[%c0_138, %c0_139] : memref<8x1xf32, #tpu.memory_space<vmem>>, vector<8x1xf32>
    %198 = vector.broadcast %197 : vector<8x1xf32> to vector<8x64xf32>
    %199 = arith.addf %196, %198 : vector<8x64xf32>
    %cst_140 = arith.constant 0.000000e+00 : f32
    %200 = vector.broadcast %cst_140 : f32 to vector<8x64xf32>
    %201 = arith.maximumf %199, %200 : vector<8x64xf32>
    %c0_141 = arith.constant 0 : index
    %c0_142 = arith.constant 0 : index
    %c0_143 = arith.constant 0 : index
    %202 = vector.load %arg7[%c0_141, %c0_142, %c0_143] : memref<1x8x64xf32, #tpu.memory_space<vmem>>, vector<1x8x64xf32>
    %203 = vector.shape_cast %202 : vector<1x8x64xf32> to vector<8x64xf32>
    %204 = vector.shape_cast %201 : vector<8x64xf32> to vector<1x8x64xf32>
    tpu.vector_store %arg7[%c0_141, %c0_142, %c0_143], %204 {strides = array<i32>} : memref<1x8x64xf32, #tpu.memory_space<vmem>>, vector<1x8x64xf32>,
    return
  }
  func.func @transform_0(%arg0: i32) -> (i32, i32, i32) {
    %c0_i32 = arith.constant 0 : i32
    %c0_i32_0 = arith.constant 0 : i32
    %c0_i32_1 = arith.constant 0 : i32
    return %arg0, %c0_i32, %c0_i32_0 : i32, i32, i32
  }
  func.func @transform_1(%arg0: i32) -> (i32, i32, i32) {
    %c0_i32 = arith.constant 0 : i32
    %c0_i32_0 = arith.constant 0 : i32
    %c0_i32_1 = arith.constant 0 : i32
    %c0_i32_2 = arith.constant 0 : i32
    return %c0_i32, %c0_i32_0, %c0_i32_1 : i32, i32, i32
  }
  func.func @transform_2(%arg0: i32) -> (i32, i32, i32) {
    %c0_i32 = arith.constant 0 : i32
    %c0_i32_0 = arith.constant 0 : i32
    %c0_i32_1 = arith.constant 0 : i32
    %c0_i32_2 = arith.constant 0 : i32
    return %c0_i32, %c0_i32_0, %c0_i32_1 : i32, i32, i32
  }
  func.func @transform_3(%arg0: i32) -> (i32, i32) {
    %c0_i32 = arith.constant 0 : i32
    %c0_i32_0 = arith.constant 0 : i32
    %c0_i32_1 = arith.constant 0 : i32
    return %c0_i32, %c0_i32_0 : i32, i32
  }
  func.func @transform_4(%arg0: i32) -> (i32, i32, i32) {
    %c0_i32 = arith.constant 0 : i32
    %c0_i32_0 = arith.constant 0 : i32
    %c0_i32_1 = arith.constant 0 : i32
    %c0_i32_2 = arith.constant 0 : i32
    return %c0_i32, %c0_i32_0, %c0_i32_1 : i32, i32, i32
  }
  func.func @transform_5(%arg0: i32) -> (i32, i32) {
    %c0_i32 = arith.constant 0 : i32
    %c0_i32_0 = arith.constant 0 : i32
    %c0_i32_1 = arith.constant 0 : i32
    return %c0_i32, %c0_i32_0 : i32, i32
  }
  func.func @transform_6(%arg0: i32) -> (i32, i32, i32) {
    %c0_i32 = arith.constant 0 : i32
    %c0_i32_0 = arith.constant 0 : i32
    %c0_i32_1 = arith.constant 0 : i32
    return %arg0, %c0_i32, %c0_i32_0 : i32, i32, i32
  }
}

</mosaic_0001>

<llo_original>
// kernel: tpu_custom_call.1
$region0: #{tpu_custom_call.1}
  #allocation0 [shape = 'u32[]', space=smem, size = 0x4, offset = 0x4, fixed_abs, tag = 'smem constant byte address 0x4 - core index']
  #allocation1 [shape = 'u32[72,128]{1,0:T(1,128)}', space=vmem, size = 0x9000, scoped, tag = 'internal scratch']
  %s0 = inlined_call_operand.vmem [shape: f32[2,4,64], index: 0, kind: input, shape index: {}]
  %s1 = inlined_call_operand.vmem [shape: f32[9,1,64], index: 1, kind: input, shape index: {}]
  %s2 = inlined_call_operand.vmem [shape: f32[9,8,4], index: 2, kind: input, shape index: {}]
  %s3 = inlined_call_operand.vmem [shape: f32[8,1], index: 3, kind: input, shape index: {}]
  %s4 = inlined_call_operand.vmem [shape: f32[9,8,8], index: 4, kind: input, shape index: {}]
  %s5 = inlined_call_operand.vmem [shape: f32[8,1], index: 5, kind: input, shape index: {}]
  %s6 = inlined_call_operand.hbm [shape: f32[2,8,64], index: 6, kind: output, shape index: {}]
  %s7 = sld [smem:[#allocation0]]
  $region57: #{tpu_custom_call.1} parent=0
    _
  %s9 = ssub.s32 1, %s7
  %s10 = scalar_select 0, %s9, %s7
  $region1: #{tpu_custom_call.1} parent=0
    #allocation2 [shape = 'u8[8192]{0}', space=vmem, size = 0x2000, scoped, tag = 'output window, operand 0']
    #allocation3 [shape = 's32[2]{0}', space=sflag, size = 0x8, scoped, tag = 'scoped memory for tpu_custom_call.1']
    %11 = vsyncpa [#allocation3], 0
    %s12 = scalar_lea.sflag [#allocation3], 1
    %13 = vsyncpa %s12, 0
    loop: start=0, step=1, limit=4
    $region2: #{tpu_custom_call.1} parent=1 // loop_pre_header
      _
    $region3: #{tpu_custom_call.1} parent=1 // loop_header
      %s15 = sphi 0, %s19
      %p16 = scmp.ge.s32.totalorder %s15, 4
      %s25 = sphi 0, %s27
      %s28 = sphi 0, %s25
      %s29 = sphi 0, %s28
      %s45 = sphi 0, %s29
      %s49 = sphi 0, %s49
      %s51 = sphi 0, %s49
      %s52 = sphi 0, %s51
      %s66 = sphi 0, %s52
      %s70 = sphi 0, %s70
      %s72 = sphi 0, %s70
      %s73 = sphi 0, %s72
      %s87 = sphi 0, %s73
      %s91 = sphi 0, %s91
      %s93 = sphi 0, %s91
      %s94 = sphi 0, %s93
      %s108 = sphi 0, %s94
      %s112 = sphi 0, %s112
      %s114 = sphi 0, %s112
      %s115 = sphi 0, %s114
      %s129 = sphi 0, %s115
      %s133 = sphi 0, %s133
      %s135 = sphi 0, %s133
      %s136 = sphi 0, %s135
      %s150 = sphi 0, %s136
      %s156 = sphi 0, %s158
      %s159 = sphi 0, %s156
      %s160 = sphi 0, %s159
      %s176 = sphi 0, %s160
    $region4: #{tpu_custom_call.1} parent=1 // loop_header_branch
      %18 = sbr.rel (%p16) target = $region8
    $region5: #{tpu_custom_call.1} parent=1 // loop_body
      %s20 = ssub.s32 %s15, 1
      %s21 = ssub.s32 %s15, 2
      %s22 = sadd.s32 %s15, 1
      %s23 = ssub.s32 %s15, %s22
      %p24 = scmp.eq.s32.totalorder %s23, 0
      %s26 = sadd.s32 %s25, 1
      %s27 = scalar_select %p24, %s25, %s26
      %p30 = pneg %p24
      %p31 = scmp.eq.s32.totalorder %s15, 1
      %p32 = por %p30, %p31
      %p33 = scmp.ne.s32.totalorder %s25, %s28
      %p34 = scmp.eq.s32.totalorder %s15, 0
      %p35 = por %p33, %p34
      %p36 = scmp.ne.s32.totalorder %s25, %s28
      %p37 = scmp.eq.s32.totalorder %s20, 1
      %p38 = por %p36, %p37
      %p39 = scmp.ne.s32.totalorder %s28, %s29
      %p40 = scmp.eq.s32.totalorder %s20, 0
      %p41 = por %p39, %p40
      %p42 = scmp.ne.s32.totalorder %s28, %s29
      %p43 = scmp.eq.s32.totalorder %s21, 1
      %p44 = por %p42, %p43
      %p46 = scmp.ne.s32.totalorder %s29, %s45
      %p47 = scmp.eq.s32.totalorder %s21, 0
      %p48 = por %p46, %p47
      %s50 = sadd.s32 %s49, 1
      %p53 = scmp.eq.s32.totalorder %s15, 1
      %p54 = scmp.ne.s32.totalorder %s49, %s51
      %p55 = scmp.eq.s32.totalorder %s15, 0
      %p56 = por %p54, %p55
      %p57 = scmp.ne.s32.totalorder %s49, %s51
      %p58 = scmp.eq.s32.totalorder %s20, 1
      %p59 = por %p57, %p58
      %p60 = scmp.ne.s32.totalorder %s51, %s52
      %p61 = scmp.eq.s32.totalorder %s20, 0
      %p62 = por %p60, %p61
      %p63 = scmp.ne.s32.totalorder %s51, %s52
      %p64 = scmp.eq.s32.totalorder %s21, 1
      %p65 = por %p63, %p64
      %p67 = scmp.ne.s32.totalorder %s52, %s66
      %p68 = scmp.eq.s32.totalorder %s21, 0
      %p69 = por %p67, %p68
      %s71 = sadd.s32 %s70, 1
      %p74 = scmp.eq.s32.totalorder %s15, 1
      %p75 = scmp.ne.s32.totalorder %s70, %s72
      %p76 = scmp.eq.s32.totalorder %s15, 0
      %p77 = por %p75, %p76
      %p78 = scmp.ne.s32.totalorder %s70, %s72
      %p79 = scmp.eq.s32.totalorder %s20, 1
      %p80 = por %p78, %p79
      %p81 = scmp.ne.s32.totalorder %s72, %s73
      %p82 = scmp.eq.s32.totalorder %s20, 0
      %p83 = por %p81, %p82
      %p84 = scmp.ne.s32.totalorder %s72, %s73
      %p85 = scmp.eq.s32.totalorder %s21, 1
      %p86 = por %p84, %p85
      %p88 = scmp.ne.s32.totalorder %s73, %s87
      %p89 = scmp.eq.s32.totalorder %s21, 0
      %p90 = por %p88, %p89
      %s92 = sadd.s32 %s91, 1
      %p95 = scmp.eq.s32.totalorder %s15, 1
      %p96 = scmp.ne.s32.totalorder %s91, %s93
      %p97 = scmp.eq.s32.totalorder %s15, 0
      %p98 = por %p96, %p97
      %p99 = scmp.ne.s32.totalorder %s91, %s93
      %p100 = scmp.eq.s32.totalorder %s20, 1
      %p101 = por %p99, %p100
      %p102 = scmp.ne.s32.totalorder %s93, %s94
      %p103 = scmp.eq.s32.totalorder %s20, 0
      %p104 = por %p102, %p103
      %p105 = scmp.ne.s32.totalorder %s93, %s94
      %p106 = scmp.eq.s32.totalorder %s21, 1
      %p107 = por %p105, %p106
      %p109 = scmp.ne.s32.totalorder %s94, %s108
      %p110 = scmp.eq.s32.totalorder %s21, 0
      %p111 = por %p109, %p110
      %s113 = sadd.s32 %s112, 1
      %p116 = scmp.eq.s32.totalorder %s15, 1
      %p117 = scmp.ne.s32.totalorder %s112, %s114
      %p118 = scmp.eq.s32.totalorder %s15, 0
      %p119 = por %p117, %p118
      %p120 = scmp.ne.s32.totalorder %s112, %s114
      %p121 = scmp.eq.s32.totalorder %s20, 1
      %p122 = por %p120, %p121
      %p123 = scmp.ne.s32.totalorder %s114, %s115
      %p124 = scmp.eq.s32.totalorder %s20, 0
      %p125 = por %p123, %p124
      %p126 = scmp.ne.s32.totalorder %s114, %s115
      %p127 = scmp.eq.s32.totalorder %s21, 1
      %p128 = por %p126, %p127
      %p130 = scmp.ne.s32.totalorder %s115, %s129
      %p131 = scmp.eq.s32.totalorder %s21, 0
      %p132 = por %p130, %p131
      %s134 = sadd.s32 %s133, 1
      %p137 = scmp.eq.s32.totalorder %s15, 1
      %p138 = scmp.ne.s32.totalorder %s133, %s135
      %p139 = scmp.eq.s32.totalorder %s15, 0
      %p140 = por %p138, %p139
      %p141 = scmp.ne.s32.totalorder %s133, %s135
      %p142 = scmp.eq.s32.totalorder %s20, 1
      %p143 = por %p141, %p142
      %p144 = scmp.ne.s32.totalorder %s135, %s136
      %p145 = scmp.eq.s32.totalorder %s20, 0
      %p146 = por %p144, %p145
      %p147 = scmp.ne.s32.totalorder %s135, %s136
      %p148 = scmp.eq.s32.totalorder %s21, 1
      %p149 = por %p147, %p148
      %p151 = scmp.ne.s32.totalorder %s136, %s150
      %p152 = scmp.eq.s32.totalorder %s21, 0
      %p153 = por %p151, %p152
      %s154 = ssub.s32 %s15, %s22
      %p155 = scmp.eq.s32.totalorder %s154, 0
      %s157 = sadd.s32 %s156, 1
      %s158 = scalar_select %p155, %s156, %s157
      %p161 = pneg %p155
      %p162 = scmp.eq.s32.totalorder %s15, 1
      %p163 = por %p161, %p162
      %p164 = scmp.ne.s32.totalorder %s156, %s159
      %p165 = scmp.eq.s32.totalorder %s15, 0
      %p166 = por %p164, %p165
      %p167 = scmp.ne.s32.totalorder %s156, %s159
      %p168 = scmp.eq.s32.totalorder %s20, 1
      %p169 = por %p167, %p168
      %p170 = scmp.ne.s32.totalorder %s159, %s160
      %p171 = scmp.eq.s32.totalorder %s20, 0
      %p172 = por %p170, %p171
      %p173 = scmp.ne.s32.totalorder %s159, %s160
      %p174 = scmp.eq.s32.totalorder %s21, 1
      %p175 = por %p173, %p174
      %p177 = scmp.ne.s32.totalorder %s160, %s176
      %p178 = scmp.eq.s32.totalorder %s21, 0
      %p179 = por %p177, %p178
      %p180 = scmp.le.s32.totalorder 1, %s15
      %p181 = scmp.lt.s32.totalorder %s15, 3
      %p182 = pnand %p180, %p181
      %p183 = pneg %p182
      // Predicated region
      $region9: #{tpu_custom_call.1} parent=5 // pred_check
        _
      $region10: #{tpu_custom_call.1} parent=5 // pred_check_branch
        %185 = sbr.rel (%p182) target = $region12
      $region11: #{tpu_custom_call.1} parent=5 // pred_region
        %s186 = ssub.s32 %s15, 1
        // Predicated region
        $region13: #{tpu_custom_call.1} parent=11 // pred_check
          %p187 = pneg %p62
        $region14: #{tpu_custom_call.1} parent=11 // pred_check_branch
          %189 = sbr.rel (%p187) target = $region16
        $region15: #{tpu_custom_call.1} parent=11 // pred_region
          _
        $region16: #{tpu_custom_call.1} parent=11 // pred_fallthru
          _
        // Predicated region
        $region17: #{tpu_custom_call.1} parent=11 // pred_check
          %p190 = pneg %p83
        $region18: #{tpu_custom_call.1} parent=11 // pred_check_branch
          %192 = sbr.rel (%p190) target = $region20
        $region19: #{tpu_custom_call.1} parent=11 // pred_region
          _
        $region20: #{tpu_custom_call.1} parent=11 // pred_fallthru
          _
        // Predicated region
        $region21: #{tpu_custom_call.1} parent=11 // pred_check
          %p193 = pneg %p104
        $region22: #{tpu_custom_call.1} parent=11 // pred_check_branch
          %195 = sbr.rel (%p193) target = $region24
        $region23: #{tpu_custom_call.1} parent=11 // pred_region
          _
        $region24: #{tpu_custom_call.1} parent=11 // pred_fallthru
          _
        // Predicated region
        $region25: #{tpu_custom_call.1} parent=11 // pred_check
          %p196 = pneg %p125
        $region26: #{tpu_custom_call.1} parent=11 // pred_check_branch
          %198 = sbr.rel (%p196) target = $region28
        $region27: #{tpu_custom_call.1} parent=11 // pred_region
          _
        $region28: #{tpu_custom_call.1} parent=11 // pred_fallthru
          _
        // Predicated region
        $region29: #{tpu_custom_call.1} parent=11 // pred_check
          %p199 = pneg %p146
        $region30: #{tpu_custom_call.1} parent=11 // pred_check_branch
          %201 = sbr.rel (%p199) target = $region32
        $region31: #{tpu_custom_call.1} parent=11 // pred_region
          _
        $region32: #{tpu_custom_call.1} parent=11 // pred_fallthru
          _
      $region12: #{tpu_custom_call.1} parent=5 // pred_fallthru
        _
      %p202 = scmp.lt.s32.totalorder %s15, 2
      // Predicated region
      $region33: #{tpu_custom_call.1} parent=5 // pred_check
        %p203 = pneg %p202
      $region34: #{tpu_custom_call.1} parent=5 // pred_check_branch
        %205 = sbr.rel (%p203) target = $region36
      $region35: #{tpu_custom_call.1} parent=5 // pred_region
        // Predicated region
        $region37: #{tpu_custom_call.1} parent=35 // pred_check
          %p206 = pneg %p35
        $region38: #{tpu_custom_call.1} parent=35 // pred_check_branch
          %208 = sbr.rel (%p206) target = $region40
        $region39: #{tpu_custom_call.1} parent=35 // pred_region
          %p209 = scmp.lt.s32.totalorder %s15, 1
          %s210 = scalar_select %p209, %s15, 1
          %s211 = smul.addr %s210, 4
          %s212 = scalar_lea.vmem %s0, %s211
        $region40: #{tpu_custom_call.1} parent=35 // pred_fallthru
          _
      $region36: #{tpu_custom_call.1} parent=5 // pred_fallthru
        _
      %p213 = scmp.le.s32.totalorder 1, %s15
      %p214 = scmp.lt.s32.totalorder %s15, 3
      %p215 = pnand %p213, %p214
      %p216 = pneg %p215
      // Predicated region
      $region41: #{tpu_custom_call.1} parent=5 // pred_check
        _
      $region42: #{tpu_custom_call.1} parent=5 // pred_check_branch
        %218 = sbr.rel (%p215) target = $region44
      $region43: #{tpu_custom_call.1} parent=5 // pred_region
        %s219 = ssub.s32 %s15, 1
        %p220 = scmp.lt.s32.totalorder %s20, 1
        %s221 = scalar_select %p220, %s20, 1
        %s222 = smul.addr %s221, 4
        %s223 = scalar_lea.vmem %s0, %s222
        %p224 = pneg %p41
        %p225 = pneg %p38
        %p226 = pneg %p62
        %p227 = pneg %p59
        %p228 = pneg %p83
        %p229 = pneg %p80
        %p230 = pneg %p104
        %p231 = pneg %p101
        %p232 = pneg %p125
        %p233 = pneg %p122
        %p234 = pneg %p146
        %p235 = pneg %p143
        %p236 = pneg %p172
        %p237 = pneg %p169
        %s238 = sand.u32 %s159, 1
        %s239 = scalar_lea.sflag [#allocation3], %s238
        %s240 = sand.u32 %s159, 1
        %s241 = smul.addr %s240, 8
        %s242 = scalar_lea.vmem [#allocation2], %s241
        %p243 = scmp.lt.s32.totalorder %s20, 1
        %s244 = scalar_select %p243, %s20, 1
        %s245 = smul.addr %s244, 4
        %s246 = scalar_lea.vmem %s0, %s245
        %v247 = vld [vmem:[%s246] sm:$0xf]
        %249 = vrot.lane.b32.xlu0 %v247, 9
        %v250 = vpop.permute.xlu0 %249
        %vm252 = vcmask 72704
        %v253 = vsel %vm252, 0.0, %v250
        %v254 = vld [vmem:[%s1] sm:$0x1]
        %v256 = vperm.slane %v254, 0
        %v258 = vmul.f32 %v253, %v256
        %v259 = vld [vmem:[%s2] sm:$0xff]
        %260 = vrot.lane.b32.xlu0 %v247, 8
        %v261 = vpop.permute.xlu0 %260
        %vm263 = vcmask 64512
        %v264 = vsel %vm263, 0.0, %v261
        %s265 = scalar_lea.vmem %s1, 1
        %v266 = vld [vmem:[%s265] sm:$0x1]
        %v268 = vperm.slane %v266, 0
        %v270 = vmul.f32 %v264, %v268
        %s271 = scalar_lea.vmem %s2, 8
        %v272 = vld [vmem:[%s271] sm:$0xff]
        %vm273 = vcmask 31744
        %v275 = vsel %vm273, %v272, 0
        %vm277 = vcmask 1043456
        %v279 = vsel %vm277, %v270, 0
        %281 = vmatpush.msra.mxu0 0.0
        %282 = vmatpush.msra.mxu0 0.0
        %283 = vmatpush.msra.mxu0 0.0
        %284 = vmatpush.msra.mxu0 0.0
        %285 = vmatpush.msra.mxu0 0.0
        %286 = vmatpush.msra.mxu0 0.0
        %287 = vmatpush.msra.mxu0 0.0
        %288 = vmatpush.msra.mxu0 0.0
        %289 = vmatpush.msra.mxu0 0.0
        %290 = vmatpush.msra.mxu0 0.0
        %291 = vmatpush.msra.mxu0 0.0
        %292 = vmatpush.msra.mxu0 0.0
        %293 = vmatpush.msra.mxu0 0.0
        %294 = vmatpush.msra.mxu0 0.0
        %295 = vmatpush.msra.mxu0 0.0
        %296 = vmatpush.msra.mxu0 %v279
        %297 = vmatmul.f32.gmra.mxu0 %v275
        %v298 = vpop.f32.mrf.mxu0
        %v299 = vadd.f32 0.0, %v298
        %300 = vdwg.mxu0
        %v302 = vsel %vm273, %v259, 0
        %v305 = vsel %vm277, %v258, 0
        %307 = vmatpush.msra.mxu0 0.0
        %308 = vmatpush.msra.mxu0 0.0
        %309 = vmatpush.msra.mxu0 0.0
        %310 = vmatpush.msra.mxu0 0.0
        %311 = vmatpush.msra.mxu0 0.0
        %312 = vmatpush.msra.mxu0 0.0
        %313 = vmatpush.msra.mxu0 0.0
        %314 = vmatpush.msra.mxu0 0.0
        %315 = vmatpush.msra.mxu0 0.0
        %316 = vmatpush.msra.mxu0 0.0
        %317 = vmatpush.msra.mxu0 0.0
        %318 = vmatpush.msra.mxu0 0.0
        %319 = vmatpush.msra.mxu0 0.0
        %320 = vmatpush.msra.mxu0 0.0
        %321 = vmatpush.msra.mxu0 0.0
        %322 = vmatpush.msra.mxu0 %v305
        %323 = vmatmul.f32.gmra.mxu0 %v302
        %v324 = vpop.f32.mrf.mxu0
        %v325 = vadd.f32 %v299, %v324
        %326 = vdwg.mxu0
        %327 = vrot.lane.b32.xlu0 %v247, 7
        %v328 = vpop.permute.xlu0 %327
        %vm330 = vcmask 56320
        %v331 = vsel %vm330, 0.0, %v328
        %s332 = scalar_lea.vmem %s1, 2
        %v333 = vld [vmem:[%s332] sm:$0x1]
        %v335 = vperm.slane %v333, 0
        %v337 = vmul.f32 %v331, %v335
        %s338 = scalar_lea.vmem %s2, 16
        %v339 = vld [vmem:[%s338] sm:$0xff]
        %v341 = vsel %vm273, %v339, 0
        %v344 = vsel %vm277, %v337, 0
        %346 = vmatpush.msra.mxu0 0.0
        %347 = vmatpush.msra.mxu0 0.0
        %348 = vmatpush.msra.mxu0 0.0
        %349 = vmatpush.msra.mxu0 0.0
        %350 = vmatpush.msra.mxu0 0.0
        %351 = vmatpush.msra.mxu0 0.0
        %352 = vmatpush.msra.mxu0 0.0
        %353 = vmatpush.msra.mxu0 0.0
        %354 = vmatpush.msra.mxu0 0.0
        %355 = vmatpush.msra.mxu0 0.0
        %356 = vmatpush.msra.mxu0 0.0
        %357 = vmatpush.msra.mxu0 0.0
        %358 = vmatpush.msra.mxu0 0.0
        %359 = vmatpush.msra.mxu0 0.0
        %360 = vmatpush.msra.mxu0 0.0
        %361 = vmatpush.msra.mxu0 %v344
        %362 = vmatmul.f32.gmra.mxu0 %v341
        %v363 = vpop.f32.mrf.mxu0
        %v364 = vadd.f32 0.0, %v363
        %365 = vdwg.mxu0
        %v366 = vadd.f32 %v325, %v364
        %367 = vrot.lane.b32.xlu0 %v247, 1
        %v368 = vpop.permute.xlu0 %367
        %vm370 = vcmask 7168
        %v371 = vsel %vm370, 0.0, %v368
        %s372 = scalar_lea.vmem %s1, 3
        %v373 = vld [vmem:[%s372] sm:$0x1]
        %v375 = vperm.slane %v373, 0
        %v377 = vmul.f32 %v371, %v375
        %s378 = scalar_lea.vmem %s2, 24
        %v379 = vld [vmem:[%s378] sm:$0xff]
        %v381 = vsel %vm273, %v379, 0
        %v384 = vsel %vm277, %v377, 0
        %386 = vmatpush.msra.mxu0 0.0
        %387 = vmatpush.msra.mxu0 0.0
        %388 = vmatpush.msra.mxu0 0.0
        %389 = vmatpush.msra.mxu0 0.0
        %390 = vmatpush.msra.mxu0 0.0
        %391 = vmatpush.msra.mxu0 0.0
        %392 = vmatpush.msra.mxu0 0.0
        %393 = vmatpush.msra.mxu0 0.0
        %394 = vmatpush.msra.mxu0 0.0
        %395 = vmatpush.msra.mxu0 0.0
        %396 = vmatpush.msra.mxu0 0.0
        %397 = vmatpush.msra.mxu0 0.0
        %398 = vmatpush.msra.mxu0 0.0
        %399 = vmatpush.msra.mxu0 0.0
        %400 = vmatpush.msra.mxu0 0.0
        %401 = vmatpush.msra.mxu0 %v384
        %402 = vmatmul.f32.gmra.mxu0 %v381
        %v403 = vpop.f32.mrf.mxu0
        %v404 = vadd.f32 0.0, %v403
        %405 = vdwg.mxu0
        %v406 = vadd.f32 %v366, %v404
        %s407 = scalar_lea.vmem %s1, 4
        %v408 = vld [vmem:[%s407] sm:$0x1]
        %v410 = vperm.slane %v408, 0
        %v412 = vmul.f32 %v247, %v410
        %s413 = scalar_lea.vmem %s2, 32
        %v414 = vld [vmem:[%s413] sm:$0xff]
        %v416 = vsel %vm273, %v414, 0
        %v419 = vsel %vm277, %v412, 0
        %421 = vmatpush.msra.mxu0 0.0
        %422 = vmatpush.msra.mxu0 0.0
        %423 = vmatpush.msra.mxu0 0.0
        %424 = vmatpush.msra.mxu0 0.0
        %425 = vmatpush.msra.mxu0 0.0
        %426 = vmatpush.msra.mxu0 0.0
        %427 = vmatpush.msra.mxu0 0.0
        %428 = vmatpush.msra.mxu0 0.0
        %429 = vmatpush.msra.mxu0 0.0
        %430 = vmatpush.msra.mxu0 0.0
        %431 = vmatpush.msra.mxu0 0.0
        %432 = vmatpush.msra.mxu0 0.0
        %433 = vmatpush.msra.mxu0 0.0
        %434 = vmatpush.msra.mxu0 0.0
        %435 = vmatpush.msra.mxu0 0.0
        %436 = vmatpush.msra.mxu0 %v419
        %437 = vmatmul.f32.gmra.mxu0 %v416
        %v438 = vpop.f32.mrf.mxu0
        %v439 = vadd.f32 0.0, %v438
        %440 = vdwg.mxu0
        %v441 = vadd.f32 %v406, %v439
        %442 = vrot.lane.b32.xlu0 %v247, 127
        %v443 = vpop.permute.xlu0 %442
        %vm445 = vcmask 515072
        %v446 = vsel %vm445, %v443, 0.0
        %s447 = scalar_lea.vmem %s1, 5
        %v448 = vld [vmem:[%s447] sm:$0x1]
        %v450 = vperm.slane %v448, 0
        %v452 = vmul.f32 %v446, %v450
        %s453 = scalar_lea.vmem %s2, 40
        %v454 = vld [vmem:[%s453] sm:$0xff]
        %v456 = vsel %vm273, %v454, 0
        %v459 = vsel %vm277, %v452, 0
        %461 = vmatpush.msra.mxu0 0.0
        %462 = vmatpush.msra.mxu0 0.0
        %463 = vmatpush.msra.mxu0 0.0
        %464 = vmatpush.msra.mxu0 0.0
        %465 = vmatpush.msra.mxu0 0.0
        %466 = vmatpush.msra.mxu0 0.0
        %467 = vmatpush.msra.mxu0 0.0
        %468 = vmatpush.msra.mxu0 0.0
        %469 = vmatpush.msra.mxu0 0.0
        %470 = vmatpush.msra.mxu0 0.0
        %471 = vmatpush.msra.mxu0 0.0
        %472 = vmatpush.msra.mxu0 0.0
        %473 = vmatpush.msra.mxu0 0.0
        %474 = vmatpush.msra.mxu0 0.0
        %475 = vmatpush.msra.mxu0 0.0
        %476 = vmatpush.msra.mxu0 %v459
        %477 = vmatmul.f32.gmra.mxu0 %v456
        %v478 = vpop.f32.mrf.mxu0
        %v479 = vadd.f32 0.0, %v478
        %480 = vdwg.mxu0
        %v481 = vadd.f32 %v441, %v479
        %482 = vrot.lane.b32.xlu0 %v247, 121
        %v483 = vpop.permute.xlu0 %482
        %vm485 = vcmask 465920
        %v486 = vsel %vm485, %v483, 0.0
        %s487 = scalar_lea.vmem %s1, 6
        %v488 = vld [vmem:[%s487] sm:$0x1]
        %v490 = vperm.slane %v488, 0
        %v492 = vmul.f32 %v486, %v490
        %s493 = scalar_lea.vmem %s2, 48
        %v494 = vld [vmem:[%s493] sm:$0xff]
        %v496 = vsel %vm273, %v494, 0
        %v499 = vsel %vm277, %v492, 0
        %501 = vmatpush.msra.mxu0 0.0
        %502 = vmatpush.msra.mxu0 0.0
        %503 = vmatpush.msra.mxu0 0.0
        %504 = vmatpush.msra.mxu0 0.0
        %505 = vmatpush.msra.mxu0 0.0
        %506 = vmatpush.msra.mxu0 0.0
        %507 = vmatpush.msra.mxu0 0.0
        %508 = vmatpush.msra.mxu0 0.0
        %509 = vmatpush.msra.mxu0 0.0
        %510 = vmatpush.msra.mxu0 0.0
        %511 = vmatpush.msra.mxu0 0.0
        %512 = vmatpush.msra.mxu0 0.0
        %513 = vmatpush.msra.mxu0 0.0
        %514 = vmatpush.msra.mxu0 0.0
        %515 = vmatpush.msra.mxu0 0.0
        %516 = vmatpush.msra.mxu0 %v499
        %517 = vmatmul.f32.gmra.mxu0 %v496
        %v518 = vpop.f32.mrf.mxu0
        %v519 = vadd.f32 0.0, %v518
        %520 = vdwg.mxu0
        %v521 = vadd.f32 %v481, %v519
        %522 = vrot.lane.b32.xlu0 %v247, 120
        %v523 = vpop.permute.xlu0 %522
        %vm525 = vcmask 457728
        %v526 = vsel %vm525, %v523, 0.0
        %s527 = scalar_lea.vmem %s1, 7
        %v528 = vld [vmem:[%s527] sm:$0x1]
        %v530 = vperm.slane %v528, 0
        %v532 = vmul.f32 %v526, %v530
        %s533 = scalar_lea.vmem %s2, 56
        %v534 = vld [vmem:[%s533] sm:$0xff]
        %v536 = vsel %vm273, %v534, 0
        %v539 = vsel %vm277, %v532, 0
        %541 = vmatpush.msra.mxu0 0.0
        %542 = vmatpush.msra.mxu0 0.0
        %543 = vmatpush.msra.mxu0 0.0
        %544 = vmatpush.msra.mxu0 0.0
        %545 = vmatpush.msra.mxu0 0.0
        %546 = vmatpush.msra.mxu0 0.0
        %547 = vmatpush.msra.mxu0 0.0
        %548 = vmatpush.msra.mxu0 0.0
        %549 = vmatpush.msra.mxu0 0.0
        %550 = vmatpush.msra.mxu0 0.0
        %551 = vmatpush.msra.mxu0 0.0
        %552 = vmatpush.msra.mxu0 0.0
        %553 = vmatpush.msra.mxu0 0.0
        %554 = vmatpush.msra.mxu0 0.0
        %555 = vmatpush.msra.mxu0 0.0
        %556 = vmatpush.msra.mxu0 %v539
        %557 = vmatmul.f32.gmra.mxu0 %v536
        %v558 = vpop.f32.mrf.mxu0
        %v559 = vadd.f32 0.0, %v558
        %560 = vdwg.mxu0
        %v561 = vadd.f32 %v521, %v559
        %562 = vrot.lane.b32.xlu0 %v247, 119
        %v563 = vpop.permute.xlu0 %562
        %vm565 = vcmask 449536
        %v566 = vsel %vm565, %v563, 0.0
        %s567 = scalar_lea.vmem %s1, 8
        %v568 = vld [vmem:[%s567] sm:$0x1]
        %v570 = vperm.slane %v568, 0
        %v572 = vmul.f32 %v566, %v570
        %s573 = scalar_lea.vmem %s2, 64
        %v574 = vld [vmem:[%s573] sm:$0xff]
        %v576 = vsel %vm273, %v574, 0
        %v579 = vsel %vm277, %v572, 0
        %581 = vmatpush.msra.mxu0 0.0
        %582 = vmatpush.msra.mxu0 0.0
        %583 = vmatpush.msra.mxu0 0.0
        %584 = vmatpush.msra.mxu0 0.0
        %585 = vmatpush.msra.mxu0 0.0
        %586 = vmatpush.msra.mxu0 0.0
        %587 = vmatpush.msra.mxu0 0.0
        %588 = vmatpush.msra.mxu0 0.0
        %589 = vmatpush.msra.mxu0 0.0
        %590 = vmatpush.msra.mxu0 0.0
        %591 = vmatpush.msra.mxu0 0.0
        %592 = vmatpush.msra.mxu0 0.0
        %593 = vmatpush.msra.mxu0 0.0
        %594 = vmatpush.msra.mxu0 0.0
        %595 = vmatpush.msra.mxu0 0.0
        %596 = vmatpush.msra.mxu0 %v579
        %597 = vmatmul.f32.gmra.mxu0 %v576
        %v598 = vpop.f32.mrf.mxu0
        %v599 = vadd.f32 0.0, %v598
        %600 = vdwg.mxu0
        %v601 = vadd.f32 %v561, %v599
        %v602 = vld [vmem:[%s3] sm:$0xff]
        %604 = vset.pattern.permute.xlu0 0
        %605 = vperm.xlu0 %604, %v602
        %v606 = vpop.permute.xlu0 %605
        %v608 = vadd.f32 %v601, %v606
        %v609 = vmax.f32 %v608, 0.0
        %611 = vrot.lane.b32.xlu0 %v609, 9
        %v612 = vpop.permute.xlu0 %611
        %v614 = vsel %vm252, 0.0, %v612
        %v615 = vmul.f32 %v614, %v256
        %v616 = vld [vmem:[%s4] sm:$0xff]
        %617 = vrot.lane.b32.xlu0 %v609, 8
        %v618 = vpop.permute.xlu0 %617
        %v620 = vsel %vm263, 0.0, %v618
        %v621 = vmul.f32 %v620, %v268
        %s622 = scalar_lea.vmem %s4, 8
        %v623 = vld [vmem:[%s622] sm:$0xff]
        %v625 = vsel %vm263, %v623, 0
        %627 = vmatpush.msra.mxu0 0.0
        %628 = vmatpush.msra.mxu0 0.0
        %629 = vmatpush.msra.mxu0 0.0
        %630 = vmatpush.msra.mxu0 0.0
        %631 = vmatpush.msra.mxu0 0.0
        %632 = vmatpush.msra.mxu0 0.0
        %633 = vmatpush.msra.mxu0 0.0
        %634 = vmatpush.msra.mxu0 0.0
        %635 = vmatpush.msra.mxu0 0.0
        %636 = vmatpush.msra.mxu0 0.0
        %637 = vmatpush.msra.mxu0 0.0
        %638 = vmatpush.msra.mxu0 0.0
        %639 = vmatpush.msra.mxu0 0.0
        %640 = vmatpush.msra.mxu0 0.0
        %641 = vmatpush.msra.mxu0 0.0
        %642 = vmatpush.msra.mxu0 %v621
        %643 = vmatmul.f32.gmra.mxu0 %v625
        %v644 = vpop.f32.mrf.mxu0
        %v645 = vadd.f32 0.0, %v644
        %646 = vdwg.mxu0
        %v648 = vsel %vm263, %v616, 0
        %650 = vmatpush.msra.mxu0 0.0
        %651 = vmatpush.msra.mxu0 0.0
        %652 = vmatpush.msra.mxu0 0.0
        %653 = vmatpush.msra.mxu0 0.0
        %654 = vmatpush.msra.mxu0 0.0
        %655 = vmatpush.msra.mxu0 0.0
        %656 = vmatpush.msra.mxu0 0.0
        %657 = vmatpush.msra.mxu0 0.0
        %658 = vmatpush.msra.mxu0 0.0
        %659 = vmatpush.msra.mxu0 0.0
        %660 = vmatpush.msra.mxu0 0.0
        %661 = vmatpush.msra.mxu0 0.0
        %662 = vmatpush.msra.mxu0 0.0
        %663 = vmatpush.msra.mxu0 0.0
        %664 = vmatpush.msra.mxu0 0.0
        %665 = vmatpush.msra.mxu0 %v615
        %666 = vmatmul.f32.gmra.mxu0 %v648
        %v667 = vpop.f32.mrf.mxu0
        %v668 = vadd.f32 %v645, %v667
        %669 = vdwg.mxu0
        %670 = vrot.lane.b32.xlu0 %v609, 7
        %v671 = vpop.permute.xlu0 %670
        %v673 = vsel %vm330, 0.0, %v671
        %v674 = vmul.f32 %v673, %v335
        %s675 = scalar_lea.vmem %s4, 16
        %v676 = vld [vmem:[%s675] sm:$0xff]
        %v678 = vsel %vm263, %v676, 0
        %680 = vmatpush.msra.mxu0 0.0
        %681 = vmatpush.msra.mxu0 0.0
        %682 = vmatpush.msra.mxu0 0.0
        %683 = vmatpush.msra.mxu0 0.0
        %684 = vmatpush.msra.mxu0 0.0
        %685 = vmatpush.msra.mxu0 0.0
        %686 = vmatpush.msra.mxu0 0.0
        %687 = vmatpush.msra.mxu0 0.0
        %688 = vmatpush.msra.mxu0 0.0
        %689 = vmatpush.msra.mxu0 0.0
        %690 = vmatpush.msra.mxu0 0.0
        %691 = vmatpush.msra.mxu0 0.0
        %692 = vmatpush.msra.mxu0 0.0
        %693 = vmatpush.msra.mxu0 0.0
        %694 = vmatpush.msra.mxu0 0.0
        %695 = vmatpush.msra.mxu0 %v674
        %696 = vmatmul.f32.gmra.mxu0 %v678
        %v697 = vpop.f32.mrf.mxu0
        %v698 = vadd.f32 0.0, %v697
        %699 = vdwg.mxu0
        %v700 = vadd.f32 %v668, %v698
        %701 = vrot.lane.b32.xlu0 %v609, 1
        %v702 = vpop.permute.xlu0 %701
        %v704 = vsel %vm370, 0.0, %v702
        %v705 = vmul.f32 %v704, %v375
        %s706 = scalar_lea.vmem %s4, 24
        %v707 = vld [vmem:[%s706] sm:$0xff]
        %v709 = vsel %vm263, %v707, 0
        %711 = vmatpush.msra.mxu0 0.0
        %712 = vmatpush.msra.mxu0 0.0
        %713 = vmatpush.msra.mxu0 0.0
        %714 = vmatpush.msra.mxu0 0.0
        %715 = vmatpush.msra.mxu0 0.0
        %716 = vmatpush.msra.mxu0 0.0
        %717 = vmatpush.msra.mxu0 0.0
        %718 = vmatpush.msra.mxu0 0.0
        %719 = vmatpush.msra.mxu0 0.0
        %720 = vmatpush.msra.mxu0 0.0
        %721 = vmatpush.msra.mxu0 0.0
        %722 = vmatpush.msra.mxu0 0.0
        %723 = vmatpush.msra.mxu0 0.0
        %724 = vmatpush.msra.mxu0 0.0
        %725 = vmatpush.msra.mxu0 0.0
        %726 = vmatpush.msra.mxu0 %v705
        %727 = vmatmul.f32.gmra.mxu0 %v709
        %v728 = vpop.f32.mrf.mxu0
        %v729 = vadd.f32 0.0, %v728
        %730 = vdwg.mxu0
        %v731 = vadd.f32 %v700, %v729
        %v732 = vmul.f32 %v609, %v410
        %s733 = scalar_lea.vmem %s4, 32
        %v734 = vld [vmem:[%s733] sm:$0xff]
        %v736 = vsel %vm263, %v734, 0
        %738 = vmatpush.msra.mxu0 0.0
        %739 = vmatpush.msra.mxu0 0.0
        %740 = vmatpush.msra.mxu0 0.0
        %741 = vmatpush.msra.mxu0 0.0
        %742 = vmatpush.msra.mxu0 0.0
        %743 = vmatpush.msra.mxu0 0.0
        %744 = vmatpush.msra.mxu0 0.0
        %745 = vmatpush.msra.mxu0 0.0
        %746 = vmatpush.msra.mxu0 0.0
        %747 = vmatpush.msra.mxu0 0.0
        %748 = vmatpush.msra.mxu0 0.0
        %749 = vmatpush.msra.mxu0 0.0
        %750 = vmatpush.msra.mxu0 0.0
        %751 = vmatpush.msra.mxu0 0.0
        %752 = vmatpush.msra.mxu0 0.0
        %753 = vmatpush.msra.mxu0 %v732
        %754 = vmatmul.f32.gmra.mxu0 %v736
        %v755 = vpop.f32.mrf.mxu0
        %v756 = vadd.f32 0.0, %v755
        %757 = vdwg.mxu0
        %v758 = vadd.f32 %v731, %v756
        %759 = vrot.lane.b32.xlu0 %v609, 127
        %v760 = vpop.permute.xlu0 %759
        %v762 = vsel %vm445, %v760, 0.0
        %v763 = vmul.f32 %v762, %v450
        %s764 = scalar_lea.vmem %s4, 40
        %v765 = vld [vmem:[%s764] sm:$0xff]
        %v767 = vsel %vm263, %v765, 0
        %769 = vmatpush.msra.mxu0 0.0
        %770 = vmatpush.msra.mxu0 0.0
        %771 = vmatpush.msra.mxu0 0.0
        %772 = vmatpush.msra.mxu0 0.0
        %773 = vmatpush.msra.mxu0 0.0
        %774 = vmatpush.msra.mxu0 0.0
        %775 = vmatpush.msra.mxu0 0.0
        %776 = vmatpush.msra.mxu0 0.0
        %777 = vmatpush.msra.mxu0 0.0
        %778 = vmatpush.msra.mxu0 0.0
        %779 = vmatpush.msra.mxu0 0.0
        %780 = vmatpush.msra.mxu0 0.0
        %781 = vmatpush.msra.mxu0 0.0
        %782 = vmatpush.msra.mxu0 0.0
        %783 = vmatpush.msra.mxu0 0.0
        %784 = vmatpush.msra.mxu0 %v763
        %785 = vmatmul.f32.gmra.mxu0 %v767
        %v786 = vpop.f32.mrf.mxu0
        %v787 = vadd.f32 0.0, %v786
        %788 = vdwg.mxu0
        %v789 = vadd.f32 %v758, %v787
        %790 = vrot.lane.b32.xlu0 %v609, 121
        %v791 = vpop.permute.xlu0 %790
        %v793 = vsel %vm485, %v791, 0.0
        %v794 = vmul.f32 %v793, %v490
        %s795 = scalar_lea.vmem %s4, 48
        %v796 = vld [vmem:[%s795] sm:$0xff]
        %v798 = vsel %vm263, %v796, 0
        %800 = vmatpush.msra.mxu0 0.0
        %801 = vmatpush.msra.mxu0 0.0
        %802 = vmatpush.msra.mxu0 0.0
        %803 = vmatpush.msra.mxu0 0.0
        %804 = vmatpush.msra.mxu0 0.0
        %805 = vmatpush.msra.mxu0 0.0
        %806 = vmatpush.msra.mxu0 0.0
        %807 = vmatpush.msra.mxu0 0.0
        %808 = vmatpush.msra.mxu0 0.0
        %809 = vmatpush.msra.mxu0 0.0
        %810 = vmatpush.msra.mxu0 0.0
        %811 = vmatpush.msra.mxu0 0.0
        %812 = vmatpush.msra.mxu0 0.0
        %813 = vmatpush.msra.mxu0 0.0
        %814 = vmatpush.msra.mxu0 0.0
        %815 = vmatpush.msra.mxu0 %v794
        %816 = vmatmul.f32.gmra.mxu0 %v798
        %v817 = vpop.f32.mrf.mxu0
        %v818 = vadd.f32 0.0, %v817
        %819 = vdwg.mxu0
        %v820 = vadd.f32 %v789, %v818
        %821 = vrot.lane.b32.xlu0 %v609, 120
        %v822 = vpop.permute.xlu0 %821
        %v824 = vsel %vm525, %v822, 0.0
        %v825 = vmul.f32 %v824, %v530
        %s826 = scalar_lea.vmem %s4, 56
        %v827 = vld [vmem:[%s826] sm:$0xff]
        %v829 = vsel %vm263, %v827, 0
        %831 = vmatpush.msra.mxu0 0.0
        %832 = vmatpush.msra.mxu0 0.0
        %833 = vmatpush.msra.mxu0 0.0
        %834 = vmatpush.msra.mxu0 0.0
        %835 = vmatpush.msra.mxu0 0.0
        %836 = vmatpush.msra.mxu0 0.0
        %837 = vmatpush.msra.mxu0 0.0
        %838 = vmatpush.msra.mxu0 0.0
        %839 = vmatpush.msra.mxu0 0.0
        %840 = vmatpush.msra.mxu0 0.0
        %841 = vmatpush.msra.mxu0 0.0
        %842 = vmatpush.msra.mxu0 0.0
        %843 = vmatpush.msra.mxu0 0.0
        %844 = vmatpush.msra.mxu0 0.0
        %845 = vmatpush.msra.mxu0 0.0
        %846 = vmatpush.msra.mxu0 %v825
        %847 = vmatmul.f32.gmra.mxu0 %v829
        %v848 = vpop.f32.mrf.mxu0
        %v849 = vadd.f32 0.0, %v848
        %850 = vdwg.mxu0
        %v851 = vadd.f32 %v820, %v849
        %852 = vrot.lane.b32.xlu0 %v609, 119
        %v853 = vpop.permute.xlu0 %852
        %v855 = vsel %vm565, %v853, 0.0
        %v856 = vmul.f32 %v855, %v570
        %s857 = scalar_lea.vmem %s4, 64
        %v858 = vld [vmem:[%s857] sm:$0xff]
        %v860 = vsel %vm263, %v858, 0
        %862 = vmatpush.msra.mxu0 0.0
        %863 = vmatpush.msra.mxu0 0.0
        %864 = vmatpush.msra.mxu0 0.0
        %865 = vmatpush.msra.mxu0 0.0
        %866 = vmatpush.msra.mxu0 0.0
        %867 = vmatpush.msra.mxu0 0.0
        %868 = vmatpush.msra.mxu0 0.0
        %869 = vmatpush.msra.mxu0 0.0
        %870 = vmatpush.msra.mxu0 0.0
        %871 = vmatpush.msra.mxu0 0.0
        %872 = vmatpush.msra.mxu0 0.0
        %873 = vmatpush.msra.mxu0 0.0
        %874 = vmatpush.msra.mxu0 0.0
        %875 = vmatpush.msra.mxu0 0.0
        %876 = vmatpush.msra.mxu0 0.0
        %877 = vmatpush.msra.mxu0 %v856
        %878 = vmatmul.f32.gmra.mxu0 %v860
        %v879 = vpop.f32.mrf.mxu0
        %v880 = vadd.f32 0.0, %v879
        %881 = vdwg.mxu0
        %v882 = vadd.f32 %v851, %v880
        %v883 = vld [vmem:[%s5] sm:$0xff]
        %885 = vset.pattern.permute.xlu0 0
        %886 = vperm.xlu0 %885, %v883
        %v887 = vpop.permute.xlu0 %886
        %v889 = vadd.f32 %v882, %v887
        %v890 = vmax.f32 %v889, 0.0
        %vm891 = vcmask 523264
        %892 = vst.msk [vmem:[%s242] sm:$0xff] %vm891, %v890
        %s893 = sand.u32 %s159, 1
        %s894 = scalar_lea.sflag [#allocation3], %s893
        %s895 = sand.u32 %s159, 1
        %s896 = smul.addr %s895, 8
        %s897 = scalar_lea.vmem [#allocation2], %s896
        // Predicated region
        $region45: #{tpu_custom_call.1} parent=43 // pred_check
          %p898 = pneg %p169
        $region46: #{tpu_custom_call.1} parent=43 // pred_check_branch
          %900 = sbr.rel (%p898) target = $region48
        $region47: #{tpu_custom_call.1} parent=43 // pred_region
          %902 = vsyncadd %s894, 0
          %s903 = smul.addr %s20, 8
          %s904 = scalar_lea.hbm %s6, %s903
          %s906 = sshll.u32 %s897, 4
          %s907 = int_to_ptr.vmem [resolvable:$true] %s906
          %s908 = sshll.u32 %s904, 4
          %s909 = int_to_ptr.hbm [resolvable:$true] %s908
          %911 = dma.vmem_to_hbm [thread:$0]  %s907, 128, %s909, %s894
        $region48: #{tpu_custom_call.1} parent=43 // pred_fallthru
          _
      $region44: #{tpu_custom_call.1} parent=5 // pred_fallthru
        _
      %p912 = scmp.le.s32.totalorder 2, %s15
      // Predicated region
      $region49: #{tpu_custom_call.1} parent=5 // pred_check
        %p913 = pneg %p912
      $region50: #{tpu_custom_call.1} parent=5 // pred_check_branch
        %915 = sbr.rel (%p913) target = $region52
      $region51: #{tpu_custom_call.1} parent=5 // pred_region
        %s916 = ssub.s32 %s15, 2
        // Predicated region
        $region53: #{tpu_custom_call.1} parent=51 // pred_check
          %p917 = pneg %p175
        $region54: #{tpu_custom_call.1} parent=51 // pred_check_branch
          %919 = sbr.rel (%p917) target = $region56
        $region55: #{tpu_custom_call.1} parent=51 // pred_region
          %s920 = sand.u32 %s160, 1
          %s921 = scalar_lea.sflag [#allocation3], %s920
          %s922 = sand.u32 %s160, 1
          %s923 = smul.addr %s922, 8
          %s924 = scalar_lea.vmem [#allocation2], %s923
          %926 = dma.done %s921, 128
        $region56: #{tpu_custom_call.1} parent=51 // pred_fallthru
          _
      $region52: #{tpu_custom_call.1} parent=5 // pred_fallthru
        _
    $region6: #{tpu_custom_call.1} parent=1 // loop_footer
      %s19 = sadd.s32 1, %s15
    $region7: #{tpu_custom_call.1} parent=1 // loop_footer_branch
      %14 = sbr.rel target = $region3
    $region8: #{tpu_custom_call.1} parent=1 // loop_exit
      _
    %927 = vsyncpa [#allocation3], 1
    %s928 = scalar_lea.sflag [#allocation3], 1
    %929 = vsyncpa %s928, 1

</llo_original>
